<compile_context>
chip_gen: v5e
topology: v5e:2x2
jax: 0.10.0
libtpu: 0.0.40
codegen_flags: <defaults>
</compile_context>

<pallas_src>
import functools

import jax
import jax.numpy as jnp
from jax.experimental import pallas as pl
from jax.experimental.pallas import tpu as pltpu

_LANES = 128
_MAX_TILE_ROWS = 1024  # 1024 * 128 * 4 B = 512 KiB per f32 input tile


def _round_up(x, m):
    return ((x + m - 1) // m) * m


def _make_group_kernel(num_stages):
    """Kernel: refs = (pred_0, ..., pred_{S-1}, target, out)."""

    def kernel(*refs):
        pred_refs = refs[:num_stages]
        tgt_ref = refs[num_stages]
        out_ref = refs[num_stages + 1]

        t = tgt_ref[...].astype(jnp.float32)
        part = jnp.zeros((1, _LANES), jnp.float32)
        for p_ref in pred_refs:
            d = p_ref[...].astype(jnp.float32) - t
            # Reduce along sublanes only; lane reduction is done in the wrapper.
            part = part + jnp.sum(d * d, axis=0, keepdims=True)
        out_ref[...] = part

    return kernel


def _to_slab(x, padded_rows):
    """Flatten to 1D, zero-pad, and view as a lane-dense (rows, 128) slab."""
    flat = x.reshape(-1)
    total = padded_rows * _LANES
    if flat.shape[0] != total:
        flat = jnp.pad(flat, (0, total - flat.shape[0]))
    return flat.reshape(padded_rows, _LANES)


def _group_mse_sum(preds, target, *, max_tile_rows=_MAX_TILE_ROWS):
    """sum over stages of mean((preds[s] - target)**2), as a scalar f32."""
    num_stages = len(preds)
    n_elem = target.size

    rows = pl.cdiv(n_elem, _LANES)
    tile_rows = min(max_tile_rows, _round_up(rows, 8))
    padded_rows = _round_up(rows, tile_rows)
    num_tiles = padded_rows // tile_rows

    pred_slabs = [_to_slab(p, padded_rows) for p in preds]
    tgt_slab = _to_slab(target, padded_rows)

    tile_spec = pl.BlockSpec((tile_rows, _LANES), lambda i: (i, 0))

    partials = pl.pallas_call(
        _make_group_kernel(num_stages),
        out_shape=jax.ShapeDtypeStruct((num_tiles, _LANES), jnp.float32),
        grid=(num_tiles,),
        in_specs=[tile_spec] * (num_stages + 1),
        out_specs=pl.BlockSpec((1, _LANES), lambda i: (i, 0)),
        compiler_params=pltpu.CompilerParams(
            dimension_semantics=("parallel",)
        ),
    )(*pred_slabs, tgt_slab)

    return jnp.sum(partials) / jnp.float32(n_elem)


def pose_loss(save_for_loss_pafs, save_for_loss_htmps, paf_target, htmp_target,
              *, max_tile_rows=_MAX_TILE_ROWS):
    """Pallas implementation of PoseLoss.forward."""
    # TODO(synk): the PAF and heatmap groups could be fused into one
    # pallas_call to amortize launch overhead, but differing channel counts
    # make per-group calls the general/simple choice; the loss per group is
    # already a single fully-pipelined kernel.
    group = functools.partial(_group_mse_sum, max_tile_rows=max_tile_rows)
    return group(save_for_loss_pafs, paf_target) + group(
        save_for_loss_htmps, htmp_target)


if __name__ == "__main__":
    key = jax.random.PRNGKey(0)
    B, Cp, Ch, H, W = 2, 4, 4, 16, 16
    n_stages = 3

    keys = jax.random.split(key, 2 * n_stages + 2)
    pafs = [jax.random.normal(keys[i], (B, Cp, H, W), dtype=jnp.float32)
            for i in range(n_stages)]
    htmps = [jax.random.normal(keys[n_stages + i], (B, Ch, H, W), dtype=jnp.float32)
             for i in range(n_stages)]
    paf_target = jax.random.normal(keys[-2], (B, Cp, H, W), dtype=jnp.float32)
    htmp_target = jax.random.normal(keys[-1], (B, Ch, H, W), dtype=jnp.float32)

    # Reference (pure JAX) check of the PyTorch semantics.
    ref = jnp.float32(0.0)
    for p in pafs:
        ref += jnp.mean((p - paf_target) ** 2)
    for h in htmps:
        ref += jnp.mean((h - htmp_target) ** 2)
    ref = jax.block_until_ready(ref)

    # Default tiling (single tile at these small shapes).
    loss = pose_loss(pafs, htmps, paf_target, htmp_target)
    loss = jax.block_until_ready(loss)
    assert jnp.allclose(loss, ref, rtol=1e-5, atol=1e-5), (loss, ref)

    # Force multiple row tiles to exercise the parallel per-tile-partial path.
    loss_tiled = pose_loss(pafs, htmps, paf_target, htmp_target, max_tile_rows=8)
    loss_tiled = jax.block_until_ready(loss_tiled)
    assert jnp.allclose(loss_tiled, ref, rtol=1e-5, atol=1e-5), (loss_tiled, ref)

    print("KERNEL_OK")
</pallas_src>

<mosaic_0001>
module attributes {stable_mosaic.version = 11 : i64} {
  func.func @kernel(%arg0: i32, %arg1: memref<16x128xf32, #tpu.memory_space<vmem>>, %arg2: memref<16x128xf32, #tpu.memory_space<vmem>>, %arg3: memref<16x128xf32, #tpu.memory_space<vmem>>, %arg4: memref<16x128xf32, #tpu.memory_space<vmem>>, %arg5: memref<1x128xf32, #tpu.memory_space<vmem>>) attributes {dimension_semantics = [#tpu.dimension_semantics<parallel>], iteration_bounds = array<i64: 1>, scalar_prefetch = 0 : i64, scratch_operands = 0 : i64, tpu.core_type = #tpu.core_type<tc>, window_params = [{transform_indices = @transform_0, window_bounds = array<i64: 16, 128>}, {transform_indices = @transform_1, window_bounds = array<i64: 16, 128>}, {transform_indices = @transform_2, window_bounds = array<i64: 16, 128>}, {transform_indices = @transform_3, window_bounds = array<i64: 16, 128>}, {transform_indices = @transform_4, window_bounds = array<i64: 1, 128>}]} {
    %c0 = arith.constant 0 : index
    %c0_0 = arith.constant 0 : index
    %0 = vector.load %arg4[%c0, %c0_0] : memref<16x128xf32, #tpu.memory_space<vmem>>, vector<16x128xf32>
    %cst = arith.constant 0.000000e+00 : f32
    %1 = vector.broadcast %cst : f32 to vector<1x128xf32>
    %c0_1 = arith.constant 0 : index
    %c0_2 = arith.constant 0 : index
    %2 = vector.load %arg1[%c0_1, %c0_2] : memref<16x128xf32, #tpu.memory_space<vmem>>, vector<16x128xf32>
    %3 = arith.subf %2, %0 : vector<16x128xf32>
    %4 = arith.mulf %3, %3 : vector<16x128xf32>
    %cst_3 = arith.constant dense<0.000000e+00> : vector<128xf32>
    %5 = vector.multi_reduction <add>, %4, %cst_3 [0] : vector<16x128xf32> to vector<128xf32>
    %6 = vector.shape_cast %5 : vector<128xf32> to vector<1x128xf32>
    %7 = arith.addf %1, %6 : vector<1x128xf32>
    %c0_4 = arith.constant 0 : index
    %c0_5 = arith.constant 0 : index
    %8 = vector.load %arg2[%c0_4, %c0_5] : memref<16x128xf32, #tpu.memory_space<vmem>>, vector<16x128xf32>
    %9 = arith.subf %8, %0 : vector<16x128xf32>
    %10 = arith.mulf %9, %9 : vector<16x128xf32>
    %cst_6 = arith.constant dense<0.000000e+00> : vector<128xf32>
    %11 = vector.multi_reduction <add>, %10, %cst_6 [0] : vector<16x128xf32> to vector<128xf32>
    %12 = vector.shape_cast %11 : vector<128xf32> to vector<1x128xf32>
    %13 = arith.addf %7, %12 : vector<1x128xf32>
    %c0_7 = arith.constant 0 : index
    %c0_8 = arith.constant 0 : index
    %14 = vector.load %arg3[%c0_7, %c0_8] : memref<16x128xf32, #tpu.memory_space<vmem>>, vector<16x128xf32>
    %15 = arith.subf %14, %0 : vector<16x128xf32>
    %16 = arith.mulf %15, %15 : vector<16x128xf32>
    %cst_9 = arith.constant dense<0.000000e+00> : vector<128xf32>
    %17 = vector.multi_reduction <add>, %16, %cst_9 [0] : vector<16x128xf32> to vector<128xf32>
    %18 = vector.shape_cast %17 : vector<128xf32> to vector<1x128xf32>
    %19 = arith.addf %13, %18 : vector<1x128xf32>
    %c0_10 = arith.constant 0 : index
    %c0_11 = arith.constant 0 : index
    %20 = vector.load %arg5[%c0_10, %c0_11] : memref<1x128xf32, #tpu.memory_space<vmem>>, vector<1x128xf32>
    tpu.vector_store %arg5[%c0_10, %c0_11], %19 {strides = array<i32>} : memref<1x128xf32, #tpu.memory_space<vmem>>, vector<1x128xf32>,
    return
  }
  func.func @transform_0(%arg0: i32) -> (i32, i32) {
    %c0_i32 = arith.constant 0 : i32
    %c0_i32_0 = arith.constant 0 : i32
    return %arg0, %c0_i32 : i32, i32
  }
  func.func @transform_1(%arg0: i32) -> (i32, i32) {
    %c0_i32 = arith.constant 0 : i32
    %c0_i32_0 = arith.constant 0 : i32
    return %arg0, %c0_i32 : i32, i32
  }
  func.func @transform_2(%arg0: i32) -> (i32, i32) {
    %c0_i32 = arith.constant 0 : i32
    %c0_i32_0 = arith.constant 0 : i32
    return %arg0, %c0_i32 : i32, i32
  }
  func.func @transform_3(%arg0: i32) -> (i32, i32) {
    %c0_i32 = arith.constant 0 : i32
    %c0_i32_0 = arith.constant 0 : i32
    return %arg0, %c0_i32 : i32, i32
  }
  func.func @transform_4(%arg0: i32) -> (i32, i32) {
    %c0_i32 = arith.constant 0 : i32
    %c0_i32_0 = arith.constant 0 : i32
    return %arg0, %c0_i32 : i32, i32
  }
}

</mosaic_0001>

<llo_original>
// kernel: tpu_custom_call.1
$region0: #{tpu_custom_call.1}
  #allocation0 [shape = 'u32[]', space=smem, size = 0x4, offset = 0x4, fixed_abs, tag = 'smem constant byte address 0x4 - core index']
  #allocation1 [shape = 'u32[72,128]{1,0:T(1,128)}', space=vmem, size = 0x9000, scoped, tag = 'internal scratch']
  %s0 = inlined_call_operand.hbm [shape: f32[16,128], index: 0, kind: input, shape index: {}]
  %s1 = inlined_call_operand.hbm [shape: f32[16,128], index: 1, kind: input, shape index: {}]
  %s2 = inlined_call_operand.hbm [shape: f32[16,128], index: 2, kind: input, shape index: {}]
  %s3 = inlined_call_operand.hbm [shape: f32[16,128], index: 3, kind: input, shape index: {}]
  %s4 = inlined_call_operand.hbm [shape: f32[1,128], index: 4, kind: output, shape index: {}]
  %s5 = sld [smem:[#allocation0]]
  $region42: #{tpu_custom_call.1} parent=0
    _
  %s7 = ssub.s32 1, %s5
  %s8 = scalar_select 0, %s7, %s5
  $region1: #{tpu_custom_call.1} parent=0
    #allocation2 [shape = 'u8[8192]{0}', space=vmem, size = 0x2000, scoped, tag = 'input window, operand 0, single buffered']
    #allocation3 [shape = 's32[1]{0}', space=sflag, size = 0x4, scoped, tag = 'scoped memory for tpu_custom_call.1']
    #allocation4 [shape = 's32[1]{0}', space=sflag, size = 0x4, scoped, tag = 'scoped memory for tpu_custom_call.1']
    #allocation5 [shape = 'u8[8192]{0}', space=vmem, size = 0x2000, scoped, tag = 'input window, operand 1, single buffered']
    #allocation6 [shape = 's32[1]{0}', space=sflag, size = 0x4, scoped, tag = 'scoped memory for tpu_custom_call.1']
    #allocation7 [shape = 'u8[8192]{0}', space=vmem, size = 0x2000, scoped, tag = 'input window, operand 2, single buffered']
    #allocation8 [shape = 'u8[8192]{0}', space=vmem, size = 0x2000, scoped, tag = 'input window, operand 3, single buffered']
    #allocation9 [shape = 's32[1]{0}', space=sflag, size = 0x4, scoped, tag = 'scoped memory for tpu_custom_call.1']
    #allocation10 [shape = 'u8[512]{0}', space=vmem, size = 0x400, scoped, tag = 'output window, operand 0, single buffered']
    %9 = vsyncpa [#allocation3], 0
    %10 = vsyncpa [#allocation6], 0
    %11 = vsyncpa [#allocation9], 0
    %12 = vsyncpa [#allocation4], 0
    // Predicated region
    $region2: #{tpu_custom_call.1} parent=1 // pred_check
      _
    $region3: #{tpu_custom_call.1} parent=1 // pred_check_branch
      %14 = sbr.rel (0) target = $region5
    $region4: #{tpu_custom_call.1} parent=1 // pred_region
      %16 = vsyncadd [#allocation3], 0
      %s17 = sshll.u32 %s0, 4
      %s18 = int_to_ptr.hbm [resolvable:$true] %s17
      %s19 = sshll.u32 [#allocation2], 4
      %s20 = int_to_ptr.vmem [resolvable:$true] %s19
      %25 = dma.hbm_to_vmem [thread:$0]  %s18, 256, %s20, [#allocation3], 128, 128, 8
    $region5: #{tpu_custom_call.1} parent=1 // pred_fallthru
      _
    // Predicated region
    $region6: #{tpu_custom_call.1} parent=1 // pred_check
      _
    $region7: #{tpu_custom_call.1} parent=1 // pred_check_branch
      %27 = sbr.rel (0) target = $region9
    $region8: #{tpu_custom_call.1} parent=1 // pred_region
      %29 = vsyncadd [#allocation6], 0
      %s30 = sshll.u32 %s1, 4
      %s31 = int_to_ptr.hbm [resolvable:$true] %s30
      %s32 = sshll.u32 [#allocation5], 4
      %s33 = int_to_ptr.vmem [resolvable:$true] %s32
      %38 = dma.hbm_to_vmem [thread:$0]  %s31, 256, %s33, [#allocation6], 128, 128, 8
    $region9: #{tpu_custom_call.1} parent=1 // pred_fallthru
      _
    // Predicated region
    $region10: #{tpu_custom_call.1} parent=1 // pred_check
      _
    $region11: #{tpu_custom_call.1} parent=1 // pred_check_branch
      %40 = sbr.rel (0) target = $region13
    $region12: #{tpu_custom_call.1} parent=1 // pred_region
      %42 = vsyncadd [#allocation6], 0
      %s43 = sshll.u32 %s2, 4
      %s44 = int_to_ptr.hbm [resolvable:$true] %s43
      %s45 = sshll.u32 [#allocation7], 4
      %s46 = int_to_ptr.vmem [resolvable:$true] %s45
      %51 = dma.hbm_to_vmem [thread:$0]  %s44, 256, %s46, [#allocation6], 128, 128, 8
    $region13: #{tpu_custom_call.1} parent=1 // pred_fallthru
      _
    // Predicated region
    $region14: #{tpu_custom_call.1} parent=1 // pred_check
      _
    $region15: #{tpu_custom_call.1} parent=1 // pred_check_branch
      %53 = sbr.rel (0) target = $region17
    $region16: #{tpu_custom_call.1} parent=1 // pred_region
      %55 = vsyncadd [#allocation9], 0
      %s56 = sshll.u32 %s3, 4
      %s57 = int_to_ptr.hbm [resolvable:$true] %s56
      %s58 = sshll.u32 [#allocation8], 4
      %s59 = int_to_ptr.vmem [resolvable:$true] %s58
      %64 = dma.hbm_to_vmem [thread:$0]  %s57, 256, %s59, [#allocation9], 128, 128, 8
    $region17: #{tpu_custom_call.1} parent=1 // pred_fallthru
      _
    // Predicated region
    $region18: #{tpu_custom_call.1} parent=1 // pred_check
      _
    $region19: #{tpu_custom_call.1} parent=1 // pred_check_branch
      %66 = sbr.rel (0) target = $region21
    $region20: #{tpu_custom_call.1} parent=1 // pred_region
      %68 = dma.done [#allocation3], 256
    $region21: #{tpu_custom_call.1} parent=1 // pred_fallthru
      _
    // Predicated region
    $region22: #{tpu_custom_call.1} parent=1 // pred_check
      _
    $region23: #{tpu_custom_call.1} parent=1 // pred_check_branch
      %70 = sbr.rel (0) target = $region25
    $region24: #{tpu_custom_call.1} parent=1 // pred_region
      %72 = dma.done [#allocation6], 256
    $region25: #{tpu_custom_call.1} parent=1 // pred_fallthru
      _
    // Predicated region
    $region26: #{tpu_custom_call.1} parent=1 // pred_check
      _
    $region27: #{tpu_custom_call.1} parent=1 // pred_check_branch
      %74 = sbr.rel (0) target = $region29
    $region28: #{tpu_custom_call.1} parent=1 // pred_region
      %76 = dma.done [#allocation6], 256
    $region29: #{tpu_custom_call.1} parent=1 // pred_fallthru
      _
    // Predicated region
    $region30: #{tpu_custom_call.1} parent=1 // pred_check
      _
    $region31: #{tpu_custom_call.1} parent=1 // pred_check_branch
      %78 = sbr.rel (0) target = $region33
    $region32: #{tpu_custom_call.1} parent=1 // pred_region
      %80 = dma.done [#allocation9], 256
    $region33: #{tpu_custom_call.1} parent=1 // pred_fallthru
      _
    %v81 = vld [vmem:[#allocation8] sm:$0xff]
    %v82 = vld [vmem:[#allocation8 + $0x8] sm:$0xff]
    %v83 = vld [vmem:[#allocation2] sm:$0xff]
    %v84 = vld [vmem:[#allocation2 + $0x8] sm:$0xff]
    %v85 = vsub.f32 %v83, %v81
    %v86 = vsub.f32 %v84, %v82
    %v87 = vmul.f32 %v85, %v85
    %v88 = vmul.f32 %v86, %v86
    %v89 = vadd.f32 %v87, %v88
    %v90 = vrot.slane %v89, 4
    %v91 = vadd.f32 %v89, %v90
    %v92 = vrot.slane %v91, 2
    %v93 = vadd.f32 %v91, %v92
    %v94 = vrot.slane %v93, 1
    %v95 = vadd.f32 %v93, %v94
    %v96 = vadd.f32 %v95, 0.0
    %v97 = vld [vmem:[#allocation5] sm:$0xff]
    %v98 = vld [vmem:[#allocation5 + $0x8] sm:$0xff]
    %v99 = vsub.f32 %v97, %v81
    %v100 = vsub.f32 %v98, %v82
    %v101 = vmul.f32 %v99, %v99
    %v102 = vmul.f32 %v100, %v100
    %v103 = vadd.f32 %v101, %v102
    %v104 = vrot.slane %v103, 4
    %v105 = vadd.f32 %v103, %v104
    %v106 = vrot.slane %v105, 2
    %v107 = vadd.f32 %v105, %v106
    %v108 = vrot.slane %v107, 1
    %v109 = vadd.f32 %v107, %v108
    %v110 = vadd.f32 %v96, %v109
    %v111 = vld [vmem:[#allocation7] sm:$0xff]
    %v112 = vld [vmem:[#allocation7 + $0x8] sm:$0xff]
    %v113 = vsub.f32 %v111, %v81
    %v114 = vsub.f32 %v112, %v82
    %v115 = vmul.f32 %v113, %v113
    %v116 = vmul.f32 %v114, %v114
    %v117 = vadd.f32 %v115, %v116
    %v118 = vrot.slane %v117, 4
    %v119 = vadd.f32 %v117, %v118
    %v120 = vrot.slane %v119, 2
    %v121 = vadd.f32 %v119, %v120
    %v122 = vrot.slane %v121, 1
    %v123 = vadd.f32 %v121, %v122
    %v124 = vadd.f32 %v110, %v123
    %125 = vst [vmem:[#allocation10] sm:$0x1] %v124
    // Predicated region
    $region34: #{tpu_custom_call.1} parent=1 // pred_check
      _
    $region35: #{tpu_custom_call.1} parent=1 // pred_check_branch
      %127 = sbr.rel (0) target = $region37
    $region36: #{tpu_custom_call.1} parent=1 // pred_region
      %129 = vsyncadd [#allocation4], 0
      %s131 = sshll.u32 [#allocation10], 4
      %s132 = int_to_ptr.vmem [resolvable:$true] %s131
      %s133 = sshll.u32 %s4, 4
      %s134 = int_to_ptr.hbm [resolvable:$true] %s133
      %136 = dma.vmem_to_hbm [thread:$0]  %s132, 16, %s134, [#allocation4]
    $region37: #{tpu_custom_call.1} parent=1 // pred_fallthru
      _
    // Predicated region
    $region38: #{tpu_custom_call.1} parent=1 // pred_check
      _
    $region39: #{tpu_custom_call.1} parent=1 // pred_check_branch
      %138 = sbr.rel (0) target = $region41
    $region40: #{tpu_custom_call.1} parent=1 // pred_region
      %140 = dma.done [#allocation4], 16
    $region41: #{tpu_custom_call.1} parent=1 // pred_fallthru
      _
    %141 = vsyncpa [#allocation3], 1
    %142 = vsyncpa [#allocation6], 1
    %143 = vsyncpa [#allocation9], 1
    %144 = vsyncpa [#allocation4], 1

</llo_original>
